<compile_context>
chip_gen: v7x
topology: tpu7x:2x2x1
jax: 0.10.0
libtpu: 0.0.40
codegen_flags: <defaults>
</compile_context>

<pallas_src>
import math
import functools

import jax
import jax.numpy as jnp
import numpy as np
from jax.experimental import pallas as pl
from jax.experimental.pallas import tpu as pltpu


def make_pe_table(d_model: int, max_len: int) -> jnp.ndarray:
    """Deterministic positional-encoding buffer, shape (max_len, dim)."""
    dim = d_model + 1 if (d_model % 2 == 1) else d_model
    position = jnp.arange(max_len, dtype=jnp.float32)[:, None]            # (L, 1)
    div_term = jnp.exp(
        jnp.arange(0, d_model, 2, dtype=jnp.float32) * (-math.log(10000.0) / d_model)
    )
    pe = jnp.zeros((max_len, dim), dtype=jnp.float32)
    pe = pe.at[:, 0::2].set(jnp.sin(position * div_term))
    pe = pe.at[:, 1::2].set(jnp.cos(position * div_term))
    return pe


def _pos_enc_kernel(seed_ref, pe_ref, x_ref, o_ref, *, p: float, train: bool):
    # pe_ref: (tS, 1, D)   x_ref / o_ref: (tS, B, D)
    y = x_ref[...] + pe_ref[...]            # broadcast along B inside the kernel

    if train and p > 0.0:
        # Inverted dropout with the TPU hardware PRNG.
        # Per-tile seed => each grid step draws an independent mask.
        pltpu.prng_seed(seed_ref[0] + pl.program_id(0))
        bits = pltpu.bitcast(pltpu.prng_random_bits(y.shape), jnp.uint32)
        # Integer threshold compare: P(keep) = 1 - p, no float conversion.
        threshold = jnp.uint32(min(0xFFFFFFFF, int(round(p * float(1 << 32)))))
        keep = bits >= threshold
        scale = jnp.asarray(1.0 / (1.0 - p), dtype=y.dtype)
        y = jnp.where(keep, y * scale, jnp.zeros_like(y))

    o_ref[...] = y


def _choose_tile_rows(S, B, D, itemsize, target_bytes=4 << 20):
    """Largest S-tile such that one (tS, B, D) block is ~target_bytes."""
    bytes_per_row = max(1, B * D * int(itemsize))
    ts = int(min(S, max(1, target_bytes // bytes_per_row)))
    if ts >= 8:
        ts -= ts % 8                         # sublane-friendly leading dim
    return max(1, ts)


def positional_encoding(x, pe_table, d_model, *, p=0.1, train=False, seed=0,
                        tile_rows=None):
    """x: (S, B, D). Returns x + pe[:S, :, :d_model] (inverted dropout if train)."""
    S, B, D = x.shape
    assert D == d_model
    pe_slice = pe_table[:S, :d_model].astype(x.dtype).reshape(S, 1, D)
    seed_arr = jnp.asarray([seed], dtype=jnp.int32)

    if tile_rows is None:
        tile_rows = _choose_tile_rows(S, B, D, jnp.dtype(x.dtype).itemsize)
    tile_rows = int(min(tile_rows, S))
    grid = (pl.cdiv(S, tile_rows),)

    kernel = functools.partial(_pos_enc_kernel, p=float(p), train=bool(train))

    compiler_params = None
    if jax.default_backend() == "tpu":
        # "parallel" lets v7x shard the S-grid across both TensorCores; the
        # raised scoped-VMEM limit mainly helps v5e (default 16 MiB of 128).
        compiler_params = pltpu.CompilerParams(
            dimension_semantics=("parallel",),
            vmem_limit_bytes=32 * 1024 * 1024,
        )

    return pl.pallas_call(
        kernel,
        out_shape=jax.ShapeDtypeStruct((S, B, D), x.dtype),
        grid=grid,
        in_specs=[
            pl.BlockSpec(memory_space=pltpu.MemorySpace.SMEM),          # seed scalar
            pl.BlockSpec((tile_rows, 1, D), lambda i: (i, 0, 0)),       # pe tile
            pl.BlockSpec((tile_rows, B, D), lambda i: (i, 0, 0)),       # x tile
        ],
        out_specs=pl.BlockSpec((tile_rows, B, D), lambda i: (i, 0, 0)),
        compiler_params=compiler_params,
    )(seed_arr, pe_slice, x)


if __name__ == "__main__":
    d_model = 32
    max_len = 64
    S, B = 8, 2

    key = jax.random.PRNGKey(0)
    x = jax.random.normal(key, (S, B, d_model), dtype=jnp.float32)
    pe_table = make_pe_table(d_model, max_len)
    ref = np.asarray(x) + np.asarray(pe_table)[:S, None, :d_model]

    # Eval mode (dropout = identity), auto tile (single grid step at this size).
    out_eval = jax.block_until_ready(
        positional_encoding(x, pe_table, d_model, p=0.1, train=False))
    np.testing.assert_allclose(np.asarray(out_eval), ref, rtol=1e-6, atol=1e-6)

    # Eval mode with a multi-step grid (tile_rows=4 -> grid of 2) to exercise
    # the tiled / pipelined path.
    out_tiled = jax.block_until_ready(
        positional_encoding(x, pe_table, d_model, p=0.1, train=False, tile_rows=4))
    np.testing.assert_allclose(np.asarray(out_tiled), ref, rtol=1e-6, atol=1e-6)

    # Train mode exercises in-kernel hardware-PRNG dropout; prng_seed only
    # lowers on a real TPU backend (no CPU/interpret rule), so gate it.
    # TODO(synk): TPU hardware PRNG stream differs from torch's dropout RNG,
    # so exact per-element mask equality with PyTorch is not reproduced.
    if jax.default_backend() == "tpu":
        p = 0.1
        out_train = jax.block_until_ready(
            positional_encoding(x, pe_table, d_model, p=p, train=True,
                                seed=42, tile_rows=4))
        o = np.asarray(out_train)
        scaled = ref * (1.0 / (1.0 - p))
        ok = np.isclose(o, scaled, rtol=1e-5, atol=1e-5) | np.isclose(o, 0.0, atol=1e-6)
        assert bool(ok.all()), "dropout output must be 0 or scaled (x + pe)"

    print("KERNEL_OK")
</pallas_src>

<mosaic_0001>
module attributes {stable_mosaic.version = 11 : i64} {
  func.func @_pos_enc_kernel(%arg0: i32, %arg1: memref<1xi32, #tpu.memory_space<smem>>, %arg2: memref<8x1x32xf32, #tpu.memory_space<vmem>>, %arg3: memref<8x2x32xf32, #tpu.memory_space<vmem>>, %arg4: memref<8x2x32xf32, #tpu.memory_space<vmem>>) attributes {dimension_semantics = [#tpu.dimension_semantics<arbitrary>], iteration_bounds = array<i64: 1>, scalar_prefetch = 0 : i64, scratch_operands = 0 : i64, tpu.core_type = #tpu.core_type<tc>, window_params = [{transform_indices = @transform_0, window_bounds = array<i64: 1>}, {transform_indices = @transform_1, window_bounds = array<i64: 8, 1, 32>}, {transform_indices = @transform_2, window_bounds = array<i64: 8, 2, 32>}, {transform_indices = @transform_3, window_bounds = array<i64: 8, 2, 32>}]} {
    %c0 = arith.constant 0 : index
    %c0_0 = arith.constant 0 : index
    %c0_1 = arith.constant 0 : index
    %0 = vector.load %arg3[%c0, %c0_0, %c0_1] : memref<8x2x32xf32, #tpu.memory_space<vmem>>, vector<8x2x32xf32>
    %c0_2 = arith.constant 0 : index
    %c0_3 = arith.constant 0 : index
    %c0_4 = arith.constant 0 : index
    %1 = vector.load %arg2[%c0_2, %c0_3, %c0_4] : memref<8x1x32xf32, #tpu.memory_space<vmem>>, vector<8x1x32xf32>
    %2 = vector.broadcast %1 : vector<8x1x32xf32> to vector<8x2x32xf32>
    %3 = arith.addf %0, %2 : vector<8x2x32xf32>
    %c0_5 = arith.constant 0 : index
    %c0_6 = arith.constant 0 : index
    %c0_7 = arith.constant 0 : index
    %4 = vector.load %arg4[%c0_5, %c0_6, %c0_7] : memref<8x2x32xf32, #tpu.memory_space<vmem>>, vector<8x2x32xf32>
    tpu.vector_store %arg4[%c0_5, %c0_6, %c0_7], %3 {strides = array<i32>} : memref<8x2x32xf32, #tpu.memory_space<vmem>>, vector<8x2x32xf32>,
    return
  }
  func.func @transform_0(%arg0: i32) -> i32 {
    %c0_i32 = arith.constant 0 : i32
    %c0_i32_0 = arith.constant 0 : i32
    return %c0_i32 : i32
  }
  func.func @transform_1(%arg0: i32) -> (i32, i32, i32) {
    %c0_i32 = arith.constant 0 : i32
    %c0_i32_0 = arith.constant 0 : i32
    %c0_i32_1 = arith.constant 0 : i32
    return %arg0, %c0_i32, %c0_i32_0 : i32, i32, i32
  }
  func.func @transform_2(%arg0: i32) -> (i32, i32, i32) {
    %c0_i32 = arith.constant 0 : i32
    %c0_i32_0 = arith.constant 0 : i32
    %c0_i32_1 = arith.constant 0 : i32
    return %arg0, %c0_i32, %c0_i32_0 : i32, i32, i32
  }
  func.func @transform_3(%arg0: i32) -> (i32, i32, i32) {
    %c0_i32 = arith.constant 0 : i32
    %c0_i32_0 = arith.constant 0 : i32
    %c0_i32_1 = arith.constant 0 : i32
    return %arg0, %c0_i32, %c0_i32_0 : i32, i32, i32
  }
}

</mosaic_0001>

<llo_original>
// kernel: tpu_custom_call.1
$region0: #{tpu_custom_call.1}
  #allocation0 [shape = 'u32[]', space=smem, size = 0x4, offset = 0x4, fixed_abs, tag = 'smem constant byte address 0x4 - core index']
  #allocation1 [shape = 'u32[144,128]{1,0:T(1,128)}', space=vmem, size = 0x12000, scoped, tag = 'internal scratch']
  #allocation2 [shape = 's32[1]{0:T(128)S(6)}', space=smem, size = 0x200, scoped, tag = 'scoped memory for tpu_custom_call.1']
  %s0 = inlined_call_operand.<no memory space> [shape: s32[1], index: 0, kind: input, shape index: {}]
  %s1 = inlined_call_operand.hbm [shape: f32[8,1,32], index: 1, kind: input, shape index: {}]
  %s2 = inlined_call_operand.hbm [shape: f32[8,2,32], index: 2, kind: input, shape index: {}]
  %s3 = inlined_call_operand.hbm [shape: f32[8,2,32], index: 3, kind: output, shape index: {}]
  %s4 = sld [smem:[#allocation0]]
  $region30: #{tpu_custom_call.1} parent=0
    _
  %s6 = ssub.s32 1, %s4
  %s7 = scalar_select 0, %s6, %s4
  %8 = sst [smem:[#allocation2]] %s0
  $region1: #{tpu_custom_call.1} parent=0
    #allocation3 [shape = 'u8[4096]{0}', space=vmem, size = 0x1000, scoped, tag = 'input window, operand 1, single buffered']
    #allocation4 [shape = 's32[1]{0}', space=sflag, size = 0x4, scoped, tag = 'scoped memory for tpu_custom_call.1']
    #allocation5 [shape = 's32[1]{0}', space=sflag, size = 0x4, scoped, tag = 'scoped memory for tpu_custom_call.1']
    #allocation6 [shape = 'u8[8192]{0}', space=vmem, size = 0x2000, scoped, tag = 'input window, operand 2, single buffered']
    #allocation7 [shape = 's32[1]{0}', space=sflag, size = 0x4, scoped, tag = 'scoped memory for tpu_custom_call.1']
    #allocation8 [shape = 'u8[8192]{0}', space=vmem, size = 0x2000, scoped, tag = 'output window, operand 0, single buffered']
    %9 = vsyncpa [#allocation4], 0
    %10 = vsyncpa [#allocation7], 0
    %11 = vsyncpa [#allocation5], 0
    // Predicated region
    $region2: #{tpu_custom_call.1} parent=1 // pred_check
      _
    $region3: #{tpu_custom_call.1} parent=1 // pred_check_branch
      %13 = sbr.rel (0) target = $region5
    $region4: #{tpu_custom_call.1} parent=1 // pred_region
      _
    $region5: #{tpu_custom_call.1} parent=1 // pred_fallthru
      _
    // Predicated region
    $region6: #{tpu_custom_call.1} parent=1 // pred_check
      _
    $region7: #{tpu_custom_call.1} parent=1 // pred_check_branch
      %15 = sbr.rel (0) target = $region9
    $region8: #{tpu_custom_call.1} parent=1 // pred_region
      %s17 = ssub.s32 128, 128
      %18 = vsyncadd [#allocation4], %s17
      %s19 = sshll.u32 [#allocation3], 4
      %s20 = int_to_ptr.vmem [resolvable:$true] %s19
      %25 = dma.hbm_to_vmem [thread:$0]  %s1, 128, %s20, [#allocation4], 16, 16, 1
    $region9: #{tpu_custom_call.1} parent=1 // pred_fallthru
      _
    // Predicated region
    $region10: #{tpu_custom_call.1} parent=1 // pred_check
      _
    $region11: #{tpu_custom_call.1} parent=1 // pred_check_branch
      %27 = sbr.rel (0) target = $region13
    $region12: #{tpu_custom_call.1} parent=1 // pred_region
      %s29 = ssub.s32 256, 256
      %30 = vsyncadd [#allocation7], %s29
      %s31 = sshll.u32 [#allocation6], 4
      %s32 = int_to_ptr.vmem [resolvable:$true] %s31
      %37 = dma.hbm_to_vmem [thread:$0]  %s2, 256, %s32, [#allocation7], 32, 32, 2
    $region13: #{tpu_custom_call.1} parent=1 // pred_fallthru
      _
    // Predicated region
    $region14: #{tpu_custom_call.1} parent=1 // pred_check
      _
    $region15: #{tpu_custom_call.1} parent=1 // pred_check_branch
      %39 = sbr.rel (0) target = $region17
    $region16: #{tpu_custom_call.1} parent=1 // pred_region
      %40 = dma.done [#allocation4], 128
    $region17: #{tpu_custom_call.1} parent=1 // pred_fallthru
      _
    // Predicated region
    $region18: #{tpu_custom_call.1} parent=1 // pred_check
      _
    $region19: #{tpu_custom_call.1} parent=1 // pred_check_branch
      %42 = sbr.rel (0) target = $region21
    $region20: #{tpu_custom_call.1} parent=1 // pred_region
      %43 = dma.done [#allocation7], 256
    $region21: #{tpu_custom_call.1} parent=1 // pred_fallthru
      _
    %v44 = vld [vmem:[#allocation6] sm:$0x3]
    %v45 = vld [vmem:[#allocation6 + $0x2] sm:$0x3]
    %v46 = vld [vmem:[#allocation6 + $0x4] sm:$0x3]
    %v47 = vld [vmem:[#allocation6 + $0x6] sm:$0x3]
    %v48 = vld [vmem:[#allocation6 + $0x8] sm:$0x3]
    %v49 = vld [vmem:[#allocation6 + $0xa] sm:$0x3]
    %v50 = vld [vmem:[#allocation6 + $0xc] sm:$0x3]
    %v51 = vld [vmem:[#allocation6 + $0xe] sm:$0x3]
    %v52 = vld [vmem:[#allocation3] sm:$0x1]
    %v53 = vld [vmem:[#allocation3 + $0x1] sm:$0x1]
    %v54 = vld [vmem:[#allocation3 + $0x2] sm:$0x1]
    %v55 = vld [vmem:[#allocation3 + $0x3] sm:$0x1]
    %v56 = vld [vmem:[#allocation3 + $0x4] sm:$0x1]
    %v57 = vld [vmem:[#allocation3 + $0x5] sm:$0x1]
    %v58 = vld [vmem:[#allocation3 + $0x6] sm:$0x1]
    %v59 = vld [vmem:[#allocation3 + $0x7] sm:$0x1]
    %v68 = vlaneseq
    %v69 = vshrl.u32 %v68, 7
    %v70 = vsub.s32 0, %v69
    %v71 = vrot.slane %v52, %v70
    %v72 = vlaneseq
    %v73 = vshrl.u32 %v72, 7
    %v74 = vsub.s32 0, %v73
    %v75 = vrot.slane %v53, %v74
    %v76 = vlaneseq
    %v77 = vshrl.u32 %v76, 7
    %v78 = vsub.s32 0, %v77
    %v79 = vrot.slane %v54, %v78
    %v80 = vlaneseq
    %v81 = vshrl.u32 %v80, 7
    %v82 = vsub.s32 0, %v81
    %v83 = vrot.slane %v55, %v82
    %v84 = vlaneseq
    %v85 = vshrl.u32 %v84, 7
    %v86 = vsub.s32 0, %v85
    %v87 = vrot.slane %v56, %v86
    %v88 = vlaneseq
    %v89 = vshrl.u32 %v88, 7
    %v90 = vsub.s32 0, %v89
    %v91 = vrot.slane %v57, %v90
    %v92 = vlaneseq
    %v93 = vshrl.u32 %v92, 7
    %v94 = vsub.s32 0, %v93
    %v95 = vrot.slane %v58, %v94
    %v96 = vlaneseq
    %v97 = vshrl.u32 %v96, 7
    %v98 = vsub.s32 0, %v97
    %v99 = vrot.slane %v59, %v98
    %v108 = vadd.f32 %v44, %v71
    %v109 = vadd.f32 %v45, %v75
    %v110 = vadd.f32 %v46, %v79
    %v111 = vadd.f32 %v47, %v83
    %v112 = vadd.f32 %v48, %v87
    %v113 = vadd.f32 %v49, %v91
    %v114 = vadd.f32 %v50, %v95
    %v115 = vadd.f32 %v51, %v99
    %vm116 = vcmask 254976
    %117 = vst.msk [vmem:[#allocation8] sm:$0x3] %vm116, %v108
    %118 = vst.msk [vmem:[#allocation8 + $0x2] sm:$0x3] %vm116, %v109
    %119 = vst.msk [vmem:[#allocation8 + $0x4] sm:$0x3] %vm116, %v110
    %120 = vst.msk [vmem:[#allocation8 + $0x6] sm:$0x3] %vm116, %v111
    %121 = vst.msk [vmem:[#allocation8 + $0x8] sm:$0x3] %vm116, %v112
    %122 = vst.msk [vmem:[#allocation8 + $0xa] sm:$0x3] %vm116, %v113
    %123 = vst.msk [vmem:[#allocation8 + $0xc] sm:$0x3] %vm116, %v114
    %124 = vst.msk [vmem:[#allocation8 + $0xe] sm:$0x3] %vm116, %v115
    // Predicated region
    $region22: #{tpu_custom_call.1} parent=1 // pred_check
      _
    $region23: #{tpu_custom_call.1} parent=1 // pred_check_branch
      %126 = sbr.rel (0) target = $region25
    $region24: #{tpu_custom_call.1} parent=1 // pred_region
      %s128 = ssub.s32 256, 256
      %129 = vsyncadd [#allocation5], %s128
      %s130 = sshll.u32 [#allocation8], 4
      %s131 = int_to_ptr.vmem [resolvable:$true] %s130
      %136 = dma.vmem_to_hbm [thread:$0]  %s131, 256, %s3, [#allocation5], 32, 32, 2
    $region25: #{tpu_custom_call.1} parent=1 // pred_fallthru
      _
    // Predicated region
    $region26: #{tpu_custom_call.1} parent=1 // pred_check
      _
    $region27: #{tpu_custom_call.1} parent=1 // pred_check_branch
      %138 = sbr.rel (0) target = $region29
    $region28: #{tpu_custom_call.1} parent=1 // pred_region
      %139 = dma.done [#allocation5], 256
    $region29: #{tpu_custom_call.1} parent=1 // pred_fallthru
      _
    %140 = vsyncpa [#allocation4], 1
    %141 = vsyncpa [#allocation7], 1
    %142 = vsyncpa [#allocation5], 1

</llo_original>
